<compile_context>
chip_gen: v6e
topology: v6e:2x2x1
jax: 0.10.0
libtpu: 0.0.40
codegen_flags: <defaults>
</compile_context>

<pallas_src>
import jax
import jax.numpy as jnp
from jax.experimental import pallas as pl
from jax.experimental.pallas import tpu as pltpu

_LANE_WIDTH = 512          # lane-dense last dim (multiple of 128)
_ROW_ALIGN = 16            # covers bf16 (16,128) and f32 (8,128) min tiles


def _round_up(x, m):
    return ((x + m - 1) // m) * m


def _plan(n_elems, itemsize, num_core_slices, target_bytes):
    """Pick (W, tile_rows, C, tiles_per_slice, padded_rows)."""
    W = _LANE_WIDTH
    rows_needed = pl.cdiv(n_elems, W)
    # Largest row-tile (multiple of 16) that keeps one input tile under target.
    max_rows = max(_ROW_ALIGN, (target_bytes // (W * itemsize)) // _ROW_ALIGN * _ROW_ALIGN)
    tile_rows = min(max_rows, _round_up(rows_needed, _ROW_ALIGN))
    n_tiles = pl.cdiv(rows_needed, tile_rows)
    C = max(1, min(num_core_slices, n_tiles))
    tiles_per_slice = pl.cdiv(n_tiles, C)
    padded_rows = C * tiles_per_slice * tile_rows
    return W, tile_rows, C, tiles_per_slice, padded_rows


def _make_kernel(tile_rows, width, return_composite):
    sub_groups = tile_rows // 8

    def _weighted(w_ref, recon_ref, cls_ref):
        # Native-dtype loads; VPU cast to f32 (free in this mem-bound kernel).
        alpha = w_ref[0]
        beta = w_ref[1]
        return (alpha * recon_ref[...].astype(jnp.float32)
                + beta * cls_ref[...].astype(jnp.float32))

    if return_composite:
        def kernel(w_ref, recon_ref, cls_ref, comp_ref, psum_ref):
            t = pl.program_id(1)

            @pl.when(t == 0)
            def _init():
                psum_ref[...] = jnp.zeros_like(psum_ref)

            comp = _weighted(w_ref, recon_ref, cls_ref)
            comp_ref[...] = comp.astype(comp_ref.dtype)
            # Leading-axis reduce = plain VPU adds into the resident (8, W) block.
            psum_ref[...] += jnp.sum(comp.reshape(sub_groups, 8, width), axis=0)
    else:
        def kernel(w_ref, recon_ref, cls_ref, psum_ref):
            t = pl.program_id(1)

            @pl.when(t == 0)
            def _init():
                psum_ref[...] = jnp.zeros_like(psum_ref)

            comp = _weighted(w_ref, recon_ref, cls_ref)
            psum_ref[...] += jnp.sum(comp.reshape(sub_groups, 8, width), axis=0)

    return kernel


def composite_loss(reconstruction_loss, classification_loss, alpha=1.0, beta=1.0,
                   *, return_composite=True, num_core_slices=2,
                   target_bytes=1 << 20):
    """Pallas composite loss.

    Inputs: per-element loss arrays of identical shape/dtype (any rank).
    Returns (composite, total) if return_composite else total.
    """
    assert reconstruction_loss.shape == classification_loss.shape
    assert reconstruction_loss.dtype == classification_loss.dtype
    orig_shape = reconstruction_loss.shape
    dtype = reconstruction_loss.dtype
    n_elems = int(reconstruction_loss.size)
    itemsize = jnp.dtype(dtype).itemsize

    W, tile_rows, C, tiles_per_slice, R = _plan(
        n_elems, itemsize, num_core_slices, target_bytes)

    # Flatten + zero-pad to a lane-dense (R, W) slab (zeros don't affect the sum).
    recon_flat = reconstruction_loss.reshape(-1)
    cls_flat = classification_loss.reshape(-1)
    pad = R * W - n_elems
    if pad:
        recon_flat = jnp.pad(recon_flat, (0, pad))
        cls_flat = jnp.pad(cls_flat, (0, pad))
    recon2d = recon_flat.reshape(R, W)
    cls2d = cls_flat.reshape(R, W)

    # Runtime weights via SMEM (no retrace when alpha/beta change).
    weights = jnp.stack([jnp.asarray(alpha, jnp.float32),
                         jnp.asarray(beta, jnp.float32)])

    kernel = _make_kernel(tile_rows, W, return_composite)

    tps = tiles_per_slice
    row_map = lambda c, t: (c * tps + t, 0)

    in_specs = [
        pl.BlockSpec(memory_space=pltpu.SMEM),        # (alpha, beta)
        pl.BlockSpec((tile_rows, W), row_map),        # reconstruction tile
        pl.BlockSpec((tile_rows, W), row_map),        # classification tile
    ]
    psum_shape = jax.ShapeDtypeStruct((C * 8, W), jnp.float32)
    psum_spec = pl.BlockSpec((8, W), lambda c, t: (c, 0))   # per-core partial sums

    if return_composite:
        out_shape = (jax.ShapeDtypeStruct((R, W), dtype), psum_shape)
        out_specs = (pl.BlockSpec((tile_rows, W), row_map), psum_spec)
    else:
        out_shape = psum_shape
        out_specs = psum_spec

    result = pl.pallas_call(
        kernel,
        grid=(C, tiles_per_slice),
        in_specs=in_specs,
        out_specs=out_specs,
        out_shape=out_shape,
        compiler_params=pltpu.CompilerParams(
            dimension_semantics=("parallel", "arbitrary")),
    )(weights, recon2d, cls2d)

    inv_n = jnp.float32(1.0 / n_elems)
    if return_composite:
        comp2d, psum = result
        total = jnp.sum(psum) * inv_n
        comp = comp2d.reshape(-1)[:n_elems].reshape(orig_shape)
        return comp, total
    total = jnp.sum(result) * inv_n
    return total


if __name__ == "__main__":
    key = jax.random.PRNGKey(0)
    k1, k2, k3, k4, k5, k6 = jax.random.split(key, 6)

    # Case 1: small f32, lane-friendly shape, unit weights (single tile).
    B, D = 8, 128
    r1 = jnp.abs(jax.random.normal(k1, (B, D), dtype=jnp.float32))
    c1 = jnp.abs(jax.random.normal(k2, (B, D), dtype=jnp.float32))
    comp1, tot1 = composite_loss(r1, c1, alpha=1.0, beta=1.0)
    jax.block_until_ready((comp1, tot1))
    ref1 = r1 + c1
    assert comp1.shape == (B, D) and comp1.dtype == jnp.float32
    assert jnp.allclose(comp1, ref1, atol=1e-5, rtol=1e-5)
    assert jnp.allclose(tot1, jnp.mean(ref1), atol=1e-5, rtol=1e-4)

    # Case 2: awkward f32 shape (D not a multiple of 128) -> padding path.
    B2, D2 = 37, 200
    r2 = jax.random.normal(k3, (B2, D2), dtype=jnp.float32)
    c2 = jax.random.normal(k4, (B2, D2), dtype=jnp.float32)
    a, b = 0.7, 0.3
    comp2, tot2 = composite_loss(r2, c2, alpha=a, beta=b)
    jax.block_until_ready((comp2, tot2))
    ref2 = a * r2 + b * c2
    assert comp2.shape == (B2, D2)
    assert jnp.allclose(comp2, ref2, atol=1e-5, rtol=1e-5)
    assert jnp.allclose(tot2, jnp.mean(ref2), atol=1e-5, rtol=1e-4)

    # Case 3: bf16 inputs, multi-tile (2 core-slices x 2 row-tiles) grid, plus the
    # total-only (no composite writeback) fast path.
    B3, D3 = 256, 512
    r3 = jax.random.normal(k5, (B3, D3), dtype=jnp.bfloat16)
    c3 = jax.random.normal(k6, (B3, D3), dtype=jnp.bfloat16)
    comp3, tot3 = composite_loss(r3, c3, alpha=a, beta=b, target_bytes=64 << 10)
    tot3_only = composite_loss(r3, c3, alpha=a, beta=b, return_composite=False,
                               target_bytes=64 << 10)
    jax.block_until_ready((comp3, tot3, tot3_only))
    ref3_f32 = a * r3.astype(jnp.float32) + b * c3.astype(jnp.float32)
    assert comp3.dtype == jnp.bfloat16 and comp3.shape == (B3, D3)
    assert jnp.allclose(comp3.astype(jnp.float32), ref3_f32, atol=2e-2, rtol=2e-2)
    assert jnp.allclose(tot3, jnp.mean(ref3_f32), atol=1e-3, rtol=1e-3)
    assert jnp.allclose(tot3_only, jnp.mean(ref3_f32), atol=1e-3, rtol=1e-3)

    print("KERNEL_OK")
</pallas_src>

<mosaic_0001>
module attributes {stable_mosaic.version = 11 : i64} {
  func.func @kernel(%arg0: i32, %arg1: i32, %arg2: memref<2xf32, #tpu.memory_space<smem>>, %arg3: memref<16x512xf32, #tpu.memory_space<vmem>>, %arg4: memref<16x512xf32, #tpu.memory_space<vmem>>, %arg5: memref<16x512xf32, #tpu.memory_space<vmem>>, %arg6: memref<8x512xf32, #tpu.memory_space<vmem>>) attributes {dimension_semantics = [#tpu.dimension_semantics<parallel>, #tpu.dimension_semantics<arbitrary>], iteration_bounds = array<i64: 1, 1>, scalar_prefetch = 0 : i64, scratch_operands = 0 : i64, tpu.core_type = #tpu.core_type<tc>, window_params = [{transform_indices = @transform_0, window_bounds = array<i64: 2>}, {transform_indices = @transform_1, window_bounds = array<i64: 16, 512>}, {transform_indices = @transform_2, window_bounds = array<i64: 16, 512>}, {transform_indices = @transform_3, window_bounds = array<i64: 16, 512>}, {transform_indices = @transform_4, window_bounds = array<i64: 8, 512>}]} {
    %c0_i32 = arith.constant 0 : i32
    %0 = arith.cmpi eq, %arg1, %c0_i32 : i32
    %1 = arith.extui %0 : i1 to i32
    %c0_i32_0 = arith.constant 0 : i32
    %2 = arith.cmpi ne, %1, %c0_i32_0 : i32
    scf.if %2 {
      %cst_11 = arith.constant 0.000000e+00 : f32
      %18 = vector.broadcast %cst_11 : f32 to vector<8x512xf32>
      %c0_12 = arith.constant 0 : index
      %c0_13 = arith.constant 0 : index
      %19 = vector.load %arg6[%c0_12, %c0_13] : memref<8x512xf32, #tpu.memory_space<vmem>>, vector<8x512xf32>
      tpu.vector_store %arg6[%c0_12, %c0_13], %18 {strides = array<i32>} : memref<8x512xf32, #tpu.memory_space<vmem>>, vector<8x512xf32>,
    } else {
    }
    %c0 = arith.constant 0 : index
    %3 = memref.load %arg2[%c0] : memref<2xf32, #tpu.memory_space<smem>>
    %c1 = arith.constant 1 : index
    %4 = memref.load %arg2[%c1] : memref<2xf32, #tpu.memory_space<smem>>
    %c0_1 = arith.constant 0 : index
    %c0_2 = arith.constant 0 : index
    %5 = vector.load %arg3[%c0_1, %c0_2] : memref<16x512xf32, #tpu.memory_space<vmem>>, vector<16x512xf32>
    %6 = vector.broadcast %3 : f32 to vector<16x512xf32>
    %7 = arith.mulf %6, %5 : vector<16x512xf32>
    %c0_3 = arith.constant 0 : index
    %c0_4 = arith.constant 0 : index
    %8 = vector.load %arg4[%c0_3, %c0_4] : memref<16x512xf32, #tpu.memory_space<vmem>>, vector<16x512xf32>
    %9 = vector.broadcast %4 : f32 to vector<16x512xf32>
    %10 = arith.mulf %9, %8 : vector<16x512xf32>
    %11 = arith.addf %7, %10 : vector<16x512xf32>
    %c0_5 = arith.constant 0 : index
    %c0_6 = arith.constant 0 : index
    %12 = vector.load %arg5[%c0_5, %c0_6] : memref<16x512xf32, #tpu.memory_space<vmem>>, vector<16x512xf32>
    tpu.vector_store %arg5[%c0_5, %c0_6], %11 {strides = array<i32>} : memref<16x512xf32, #tpu.memory_space<vmem>>, vector<16x512xf32>,
    %c0_7 = arith.constant 0 : index
    %c0_8 = arith.constant 0 : index
    %13 = vector.load %arg6[%c0_7, %c0_8] : memref<8x512xf32, #tpu.memory_space<vmem>>, vector<8x512xf32>
    %14 = vector.shape_cast %11 : vector<16x512xf32> to vector<2x8x512xf32>
    %cst = arith.constant dense<0.000000e+00> : vector<8x512xf32>
    %15 = vector.multi_reduction <add>, %14, %cst [0] : vector<2x8x512xf32> to vector<8x512xf32>
    %16 = arith.addf %13, %15 : vector<8x512xf32>
    %c0_9 = arith.constant 0 : index
    %c0_10 = arith.constant 0 : index
    %17 = vector.load %arg6[%c0_9, %c0_10] : memref<8x512xf32, #tpu.memory_space<vmem>>, vector<8x512xf32>
    tpu.vector_store %arg6[%c0_9, %c0_10], %16 {strides = array<i32>} : memref<8x512xf32, #tpu.memory_space<vmem>>, vector<8x512xf32>,
    return
  }
  func.func @transform_0(%arg0: i32, %arg1: i32) -> i32 {
    %c0_i32 = arith.constant 0 : i32
    %c0_i32_0 = arith.constant 0 : i32
    return %c0_i32 : i32
  }
  func.func @transform_1(%arg0: i32, %arg1: i32) -> (i32, i32) {
    %c1_i32 = arith.constant 1 : i32
    %0 = arith.muli %arg0, %c1_i32 : i32
    %1 = arith.addi %0, %arg1 : i32
    %c0_i32 = arith.constant 0 : i32
    %c0_i32_0 = arith.constant 0 : i32
    return %1, %c0_i32 : i32, i32
  }
  func.func @transform_2(%arg0: i32, %arg1: i32) -> (i32, i32) {
    %c1_i32 = arith.constant 1 : i32
    %0 = arith.muli %arg0, %c1_i32 : i32
    %1 = arith.addi %0, %arg1 : i32
    %c0_i32 = arith.constant 0 : i32
    %c0_i32_0 = arith.constant 0 : i32
    return %1, %c0_i32 : i32, i32
  }
  func.func @transform_3(%arg0: i32, %arg1: i32) -> (i32, i32) {
    %c1_i32 = arith.constant 1 : i32
    %0 = arith.muli %arg0, %c1_i32 : i32
    %1 = arith.addi %0, %arg1 : i32
    %c0_i32 = arith.constant 0 : i32
    %c0_i32_0 = arith.constant 0 : i32
    return %1, %c0_i32 : i32, i32
  }
  func.func @transform_4(%arg0: i32, %arg1: i32) -> (i32, i32) {
    %c0_i32 = arith.constant 0 : i32
    %c0_i32_0 = arith.constant 0 : i32
    return %arg0, %c0_i32 : i32, i32
  }
}

</mosaic_0001>

<llo_original>
// kernel: tpu_custom_call.1
$region0: #{tpu_custom_call.1}
  #allocation0 [shape = 'u32[]', space=smem, size = 0x4, offset = 0x4, fixed_abs, tag = 'smem constant byte address 0x4 - core index']
  #allocation1 [shape = 'u32[144,128]{1,0:T(1,128)}', space=vmem, size = 0x12000, scoped, tag = 'internal scratch']
  %s0 = inlined_call_operand.hbm [shape: f32[2], index: 0, kind: input, shape index: {}]
  %s1 = inlined_call_operand.hbm [shape: f32[16,512], index: 1, kind: input, shape index: {}]
  %s2 = inlined_call_operand.hbm [shape: f32[16,512], index: 2, kind: input, shape index: {}]
  %s3 = inlined_call_operand.hbm [shape: f32[16,512], index: 3, kind: output, shape index: {0}]
  %s4 = inlined_call_operand.hbm [shape: f32[8,512], index: 4, kind: output, shape index: {1}]
  %5 = xla_tuple %s3, %s4
  %s6 = sld [smem:[#allocation0]]
  $region46: #{tpu_custom_call.1} parent=0
    _
  %s8 = ssub.s32 1, %s6
  %s9 = scalar_select 0, %s8, %s6
  $region1: #{tpu_custom_call.1} parent=0
    #allocation2 [shape = 'u8[512]{0}', space=smem, size = 0x200, scoped, tag = 'input window, operand 0, single buffered']
    #allocation3 [shape = 's32[1]{0}', space=sflag, size = 0x4, scoped, tag = 'scoped memory for tpu_custom_call.1']
    #allocation4 [shape = 's32[1]{0}', space=sflag, size = 0x4, scoped, tag = 'scoped memory for tpu_custom_call.1']
    #allocation5 [shape = 's32[1]{0}', space=sflag, size = 0x4, scoped, tag = 'scoped memory for tpu_custom_call.1']
    #allocation6 [shape = 'u8[32768]{0}', space=vmem, size = 0x8000, scoped, tag = 'input window, operand 1, single buffered']
    #allocation7 [shape = 'u8[32768]{0}', space=vmem, size = 0x8000, scoped, tag = 'input window, operand 2, single buffered']
    #allocation8 [shape = 's32[1]{0}', space=sflag, size = 0x4, scoped, tag = 'scoped memory for tpu_custom_call.1']
    #allocation9 [shape = 'u8[32768]{0}', space=vmem, size = 0x8000, scoped, tag = 'output window, operand 0, single buffered']
    #allocation10 [shape = 'u8[16384]{0}', space=vmem, size = 0x4000, scoped, tag = 'output window, operand 1, single buffered']
    #allocation11 [shape = 's32[1]{0}', space=sflag, size = 0x4, scoped, tag = 'scoped memory for tpu_custom_call.1']
    %10 = vsyncpa [#allocation5], 0
    %11 = vsyncpa [#allocation3], 0
    %12 = vsyncpa [#allocation8], 0
    %13 = vsyncpa [#allocation4], 0
    %14 = vsyncpa [#allocation11], 0
    // Predicated region
    $region2: #{tpu_custom_call.1} parent=1 // pred_check
      _
    $region3: #{tpu_custom_call.1} parent=1 // pred_check_branch
      %16 = sbr.rel (0) target = $region5
    $region4: #{tpu_custom_call.1} parent=1 // pred_region
      %s18 = ssub.s32 16, 16
      %19 = vsyncadd [#allocation5], %s18
      %22 = dma.hbm_to_smem %s0, 16, [#allocation2], [#allocation5]
    $region5: #{tpu_custom_call.1} parent=1 // pred_fallthru
      _
    // Predicated region
    $region6: #{tpu_custom_call.1} parent=1 // pred_check
      _
    $region7: #{tpu_custom_call.1} parent=1 // pred_check_branch
      %24 = sbr.rel (0) target = $region9
    $region8: #{tpu_custom_call.1} parent=1 // pred_region
      %s25 = sadd.s32 0, 0
      %s26 = smul.u32 2, %s25
      %s28 = ssub.s32 1024, 1024
      %29 = vsyncadd [#allocation3], %s28
      %s30 = smul.addr %s26, 4
      %s31 = smul.addr %s30, 128
      %s32 = scalar_lea.hbm %s1, %s31
      %s33 = sshll.u32 [#allocation6], 4
      %s34 = int_to_ptr.vmem [resolvable:$true] %s33
      %39 = dma.hbm_to_vmem [thread:$0]  %s32, 1024, %s34, [#allocation3], 512, 512, 32
    $region9: #{tpu_custom_call.1} parent=1 // pred_fallthru
      _
    // Predicated region
    $region10: #{tpu_custom_call.1} parent=1 // pred_check
      _
    $region11: #{tpu_custom_call.1} parent=1 // pred_check_branch
      %41 = sbr.rel (0) target = $region13
    $region12: #{tpu_custom_call.1} parent=1 // pred_region
      %s42 = sadd.s32 0, 0
      %s43 = smul.u32 2, %s42
      %s45 = ssub.s32 1024, 1024
      %46 = vsyncadd [#allocation8], %s45
      %s47 = smul.addr %s43, 4
      %s48 = smul.addr %s47, 128
      %s49 = scalar_lea.hbm %s2, %s48
      %s50 = sshll.u32 [#allocation7], 4
      %s51 = int_to_ptr.vmem [resolvable:$true] %s50
      %56 = dma.hbm_to_vmem [thread:$0]  %s49, 1024, %s51, [#allocation8], 512, 512, 32
    $region13: #{tpu_custom_call.1} parent=1 // pred_fallthru
      _
    // Predicated region
    $region14: #{tpu_custom_call.1} parent=1 // pred_check
      _
    $region15: #{tpu_custom_call.1} parent=1 // pred_check_branch
      %58 = sbr.rel (0) target = $region17
    $region16: #{tpu_custom_call.1} parent=1 // pred_region
      %59 = dma.done [#allocation5], 16
    $region17: #{tpu_custom_call.1} parent=1 // pred_fallthru
      _
    // Predicated region
    $region18: #{tpu_custom_call.1} parent=1 // pred_check
      _
    $region19: #{tpu_custom_call.1} parent=1 // pred_check_branch
      %61 = sbr.rel (0) target = $region21
    $region20: #{tpu_custom_call.1} parent=1 // pred_region
      %62 = dma.done [#allocation3], 1024
    $region21: #{tpu_custom_call.1} parent=1 // pred_fallthru
      _
    // Predicated region
    $region22: #{tpu_custom_call.1} parent=1 // pred_check
      _
    $region23: #{tpu_custom_call.1} parent=1 // pred_check_branch
      %64 = sbr.rel (0) target = $region25
    $region24: #{tpu_custom_call.1} parent=1 // pred_region
      %65 = dma.done [#allocation8], 1024
    $region25: #{tpu_custom_call.1} parent=1 // pred_fallthru
      _
    %66 = sfence
    %s67 = sadd.s32 0, 0
    %s68 = smul.u32 2, %s67
    %s69 = sadd.s32 0, 0
    %s70 = smul.u32 2, %s69
    %s71 = sadd.s32 0, 0
    %s72 = smul.u32 2, %s71
    %p73 = scmp.eq.s32.totalorder 0, 0
    // Predicated region
    $region26: #{tpu_custom_call.1} parent=1 // pred_check
      %p74 = pneg %p73
    $region27: #{tpu_custom_call.1} parent=1 // pred_check_branch
      %76 = sbr.rel (%p74) target = $region29
    $region28: #{tpu_custom_call.1} parent=1 // pred_region
      %77 = vst [vmem:[#allocation10] sm:$0xff] 0.0
      %78 = vst [vmem:[#allocation10 + $0x8] sm:$0xff] 0.0
      %79 = vst [vmem:[#allocation10 + $0x10] sm:$0xff] 0.0
      %80 = vst [vmem:[#allocation10 + $0x18] sm:$0xff] 0.0
    $region29: #{tpu_custom_call.1} parent=1 // pred_fallthru
      _
    %s81 = sld [smem:[#allocation2]]
    %s82 = sld [smem:[#allocation2 + $0x1]]
    %v83 = vld [vmem:[#allocation6] sm:$0xff]
    %v84 = vld [vmem:[#allocation6 + $0x8] sm:$0xff]
    %v85 = vld [vmem:[#allocation6 + $0x10] sm:$0xff]
    %v86 = vld [vmem:[#allocation6 + $0x18] sm:$0xff]
    %v87 = vld [vmem:[#allocation6 + $0x20] sm:$0xff]
    %v88 = vld [vmem:[#allocation6 + $0x28] sm:$0xff]
    %v89 = vld [vmem:[#allocation6 + $0x30] sm:$0xff]
    %v90 = vld [vmem:[#allocation6 + $0x38] sm:$0xff]
    %v91 = vstv %s81
    %v92 = vmul.f32 %v91, %v83
    %v93 = vmul.f32 %v91, %v84
    %v94 = vmul.f32 %v91, %v85
    %v95 = vmul.f32 %v91, %v86
    %v96 = vmul.f32 %v91, %v87
    %v97 = vmul.f32 %v91, %v88
    %v98 = vmul.f32 %v91, %v89
    %v99 = vmul.f32 %v91, %v90
    %v100 = vld [vmem:[#allocation7] sm:$0xff]
    %v101 = vld [vmem:[#allocation7 + $0x8] sm:$0xff]
    %v102 = vld [vmem:[#allocation7 + $0x10] sm:$0xff]
    %v103 = vld [vmem:[#allocation7 + $0x18] sm:$0xff]
    %v104 = vld [vmem:[#allocation7 + $0x20] sm:$0xff]
    %v105 = vld [vmem:[#allocation7 + $0x28] sm:$0xff]
    %v106 = vld [vmem:[#allocation7 + $0x30] sm:$0xff]
    %v107 = vld [vmem:[#allocation7 + $0x38] sm:$0xff]
    %v108 = vstv %s82
    %v109 = vmul.f32 %v108, %v100
    %v110 = vmul.f32 %v108, %v101
    %v111 = vmul.f32 %v108, %v102
    %v112 = vmul.f32 %v108, %v103
    %v113 = vmul.f32 %v108, %v104
    %v114 = vmul.f32 %v108, %v105
    %v115 = vmul.f32 %v108, %v106
    %v116 = vmul.f32 %v108, %v107
    %v117 = vadd.f32 %v92, %v109
    %v118 = vadd.f32 %v93, %v110
    %v119 = vadd.f32 %v94, %v111
    %v120 = vadd.f32 %v95, %v112
    %v121 = vadd.f32 %v96, %v113
    %v122 = vadd.f32 %v97, %v114
    %v123 = vadd.f32 %v98, %v115
    %v124 = vadd.f32 %v99, %v116
    %125 = vst [vmem:[#allocation9] sm:$0xff] %v117
    %126 = vst [vmem:[#allocation9 + $0x8] sm:$0xff] %v118
    %127 = vst [vmem:[#allocation9 + $0x10] sm:$0xff] %v119
    %128 = vst [vmem:[#allocation9 + $0x18] sm:$0xff] %v120
    %129 = vst [vmem:[#allocation9 + $0x20] sm:$0xff] %v121
    %130 = vst [vmem:[#allocation9 + $0x28] sm:$0xff] %v122
    %131 = vst [vmem:[#allocation9 + $0x30] sm:$0xff] %v123
    %132 = vst [vmem:[#allocation9 + $0x38] sm:$0xff] %v124
    %v133 = vld [vmem:[#allocation10] sm:$0xff]
    %v134 = vld [vmem:[#allocation10 + $0x8] sm:$0xff]
    %v135 = vld [vmem:[#allocation10 + $0x10] sm:$0xff]
    %v136 = vld [vmem:[#allocation10 + $0x18] sm:$0xff]
    %v137 = vadd.f32 %v117, %v121
    %v138 = vadd.f32 %v118, %v122
    %v139 = vadd.f32 %v119, %v123
    %v140 = vadd.f32 %v120, %v124
    %v141 = vadd.f32 %v133, %v137
    %v142 = vadd.f32 %v134, %v138
    %v143 = vadd.f32 %v135, %v139
    %v144 = vadd.f32 %v136, %v140
    %145 = vst [vmem:[#allocation10] sm:$0xff] %v141
    %146 = vst [vmem:[#allocation10 + $0x8] sm:$0xff] %v142
    %147 = vst [vmem:[#allocation10 + $0x10] sm:$0xff] %v143
    %148 = vst [vmem:[#allocation10 + $0x18] sm:$0xff] %v144
    // Predicated region
    $region30: #{tpu_custom_call.1} parent=1 // pred_check
      _
    $region31: #{tpu_custom_call.1} parent=1 // pred_check_branch
      %150 = sbr.rel (0) target = $region33
    $region32: #{tpu_custom_call.1} parent=1 // pred_region
      %s151 = sadd.s32 0, 0
      %s152 = smul.u32 2, %s151
      %s154 = ssub.s32 1024, 1024
      %155 = vsyncadd [#allocation4], %s154
      %s156 = smul.addr %s152, 4
      %s157 = smul.addr %s156, 128
      %s158 = scalar_lea.hbm %s3, %s157
      %s159 = sshll.u32 [#allocation9], 4
      %s160 = int_to_ptr.vmem [resolvable:$true] %s159
      %165 = dma.vmem_to_hbm [thread:$0]  %s160, 1024, %s158, [#allocation4], 512, 512, 32
    $region33: #{tpu_custom_call.1} parent=1 // pred_fallthru
      _
    // Predicated region
    $region34: #{tpu_custom_call.1} parent=1 // pred_check
      _
    $region35: #{tpu_custom_call.1} parent=1 // pred_check_branch
      %167 = sbr.rel (0) target = $region37
    $region36: #{tpu_custom_call.1} parent=1 // pred_region
      %s169 = ssub.s32 512, 512
      %170 = vsyncadd [#allocation11], %s169
      %s172 = sshll.u32 [#allocation10], 4
      %s173 = int_to_ptr.vmem [resolvable:$true] %s172
      %175 = dma.vmem_to_hbm [thread:$0]  %s173, 512, %s4, [#allocation11]
    $region37: #{tpu_custom_call.1} parent=1 // pred_fallthru
      _
    // Predicated region
    $region38: #{tpu_custom_call.1} parent=1 // pred_check
      _
    $region39: #{tpu_custom_call.1} parent=1 // pred_check_branch
      %177 = sbr.rel (0) target = $region41
    $region40: #{tpu_custom_call.1} parent=1 // pred_region
      %178 = dma.done [#allocation4], 1024
    $region41: #{tpu_custom_call.1} parent=1 // pred_fallthru
      _
    // Predicated region
    $region42: #{tpu_custom_call.1} parent=1 // pred_check
      _
    $region43: #{tpu_custom_call.1} parent=1 // pred_check_branch
      %180 = sbr.rel (0) target = $region45
    $region44: #{tpu_custom_call.1} parent=1 // pred_region
      %181 = dma.done [#allocation11], 512
    $region45: #{tpu_custom_call.1} parent=1 // pred_fallthru
      _
    %182 = vsyncpa [#allocation3], 1
    %183 = vsyncpa [#allocation8], 1
    %184 = vsyncpa [#allocation4], 1
    %185 = vsyncpa [#allocation11], 1
    %186 = vsyncpa [#allocation5], 1

</llo_original>
